<compile_context>
chip_gen: v5e
topology: v5e:2x2
jax: 0.10.0
libtpu: 0.0.40
codegen_flags: <defaults>
</compile_context>

<pallas_src>
import functools

import jax
import jax.numpy as jnp
from jax.experimental import pallas as pl
from jax.experimental.pallas import tpu as pltpu


def _round_up(x, m):
    return ((x + m - 1) // m) * m


def _graph_emb_kernel(h_ref, batch_ref, w_ref, b_ref, out_ref, *, aggr, gate_col):
    step = pl.program_id(1)

    @pl.when(step == 0)
    def _():
        out_ref[...] = jnp.zeros_like(out_ref)

    h = h_ref[...]                                            # (TN, ndim) bf16
    tile_n = h.shape[0]
    g_pad = out_ref.shape[0]

    # Fused f_m (+ g_m gate / count column) projection on the MXU, f32 acc.
    hv = jnp.dot(h, w_ref[...],
                 preferred_element_type=jnp.float32) + b_ref[...]   # (TN, d_pad)

    if aggr == 'gsum':
        # Gate logits ride in padding column `gate_col` of the fused matmul.
        logits = hv[:, gate_col:gate_col + 1]                 # (TN, 1)
        z = jnp.exp(-jnp.abs(logits))                         # EUP
        gate = jnp.where(logits >= 0.0, 1.0, z) * pl.reciprocal(1.0 + z, approx=True)
        hg = hv * gate                                        # (TN, d_pad)
    else:  # 'mean' -- count column is already 1.0 per node via the fused bias
        hg = hv

    # One-hot node->graph assignment; padded nodes (batch == -1) -> zero row.
    node_graph = batch_ref[...]                               # (TN, 1) int32
    graph_ids = jax.lax.broadcasted_iota(jnp.int32, (tile_n, g_pad), 1)
    a = (node_graph == graph_ids).astype(jnp.bfloat16)        # exact 0/1

    # scatter-add as A^T @ h_G on the MXU (bf16 inputs, f32 accumulation),
    # accumulated directly into the resident output block.
    out_ref[...] += jax.lax.dot_general(
        a, hg.astype(jnp.bfloat16), (((0,), (0,)), ((), ())),
        preferred_element_type=jnp.float32)                   # (g_pad, d_pad)


def graph_emb(h, batch, w_f, b_f, w_g, b_g, num_graphs, aggr='gsum',
              tile_n=512, num_splits=1):
    """Pallas GraphEmb forward.

    h:      (num_nodes, ndim) node features
    batch:  (num_nodes,) int graph-membership ids in [0, num_graphs)
    w_f:    (gdim, ndim), b_f: (gdim,)   -- f_m Linear
    w_g:    (1, ndim),    b_g: (1,)      -- g_m Linear (used for 'gsum')
    num_splits: set 2 on v7x to shard the node loop across both TensorCores.
    returns (num_graphs, gdim)
    """
    assert aggr in ('gsum', 'mean')
    n, ndim = h.shape
    gdim = w_f.shape[0]

    g_pad = _round_up(max(num_graphs, 1), 8)       # sublane-aligned output rows
    d_pad = _round_up(gdim + 1, 128)               # lane-dense output + spare col
    gate_col = gdim                                # gate logit / count column

    # --- node tiling (largest tile that fits data + VMEM budget) -----------
    n_per_split = -(-n // num_splits)
    tn = min(max(_round_up(tile_n, 16), 16), _round_up(max(n_per_split, 1), 16))
    # keep the double-buffered bf16 h stream under ~16 MiB (v7x-safe headroom)
    tn_cap = max(16, (((16 << 20) // (4 * max(ndim, 1))) // 16) * 16)
    tn = min(tn, tn_cap)
    steps = -(-n_per_split // tn)
    n_pad = num_splits * steps * tn
    pad = n_pad - n

    # --- operand prep -------------------------------------------------------
    h_p = jnp.pad(h.astype(jnp.bfloat16), ((0, pad), (0, 0)))
    batch_p = jnp.pad(batch.astype(jnp.int32), (0, pad),
                      constant_values=-1).reshape(n_pad, 1)

    # Fused weight: columns [0, gdim) = W_f^T, column gdim = W_g^T (gsum) or
    # a constant-1 count column carried by the bias (mean); rest zero padding.
    w_cat = jnp.zeros((ndim, d_pad), jnp.float32)
    w_cat = w_cat.at[:, :gdim].set(w_f.astype(jnp.float32).T)
    b_cat = jnp.zeros((1, d_pad), jnp.float32)
    b_cat = b_cat.at[:, :gdim].set(b_f.astype(jnp.float32).reshape(1, gdim))
    if aggr == 'gsum':
        w_cat = w_cat.at[:, gate_col].set(w_g.astype(jnp.float32).reshape(ndim))
        b_cat = b_cat.at[:, gate_col].set(b_g.astype(jnp.float32).reshape(())[()])
    else:
        b_cat = b_cat.at[:, gate_col].set(1.0)     # per-node count rides the bias
    w_cat = w_cat.astype(jnp.bfloat16)

    # --- explicit scoped-VMEM hint (defaults: 16 MiB v5e / 32 MiB v6e,v7x) --
    vmem_need = (2 * tn * ndim * 2                 # h, double-buffered bf16
                 + 2 * tn * 4                      # batch ids
                 + 2 * (ndim * d_pad * 2 + d_pad * 4)   # fused weight + bias
                 + 2 * g_pad * d_pad * 4)          # resident output block
    vmem_limit = int(min(max(2 * vmem_need + (4 << 20), 32 << 20), 48 << 20))

    kernel = functools.partial(_graph_emb_kernel, aggr=aggr, gate_col=gate_col)

    out = pl.pallas_call(
        kernel,
        out_shape=jax.ShapeDtypeStruct((num_splits, g_pad, d_pad), jnp.float32),
        grid_spec=pltpu.PrefetchScalarGridSpec(
            num_scalar_prefetch=0,
            grid=(num_splits, steps),
            in_specs=[
                pl.BlockSpec((tn, ndim), lambda c, i: (c * steps + i, 0)),    # h
                pl.BlockSpec((tn, 1), lambda c, i: (c * steps + i, 0)),       # batch
                pl.BlockSpec((ndim, d_pad), lambda c, i: (0, 0)),             # fused W^T
                pl.BlockSpec((1, d_pad), lambda c, i: (0, 0)),                # fused bias
            ],
            out_specs=pl.BlockSpec((None, g_pad, d_pad), lambda c, i: (c, 0, 0)),
        ),
        compiler_params=pltpu.CompilerParams(
            dimension_semantics=("parallel", "arbitrary"),
            vmem_limit_bytes=vmem_limit),
    )(h_p, batch_p, w_cat, b_cat)

    # Tiny epilogue in the wrapper: sum per-split partials, mean-normalize,
    # slice off lane/sublane padding. O(num_graphs * gdim) -- negligible.
    total = out[0] if num_splits == 1 else jnp.sum(out, axis=0)   # (g_pad, d_pad)
    if aggr == 'mean':
        cnt = total[:, gate_col:gate_col + 1]
        total = total / jnp.maximum(cnt, 1.0)
    return total[:num_graphs, :gdim]


def _graph_emb_ref(h, batch, w_f, b_f, w_g, b_g, num_graphs, aggr):
    # Pure-JAX reference mirroring the PyTorch forward. Inputs are quantized
    # to bf16 to match the kernel's streaming precision; math stays f32.
    q = lambda x: x.astype(jnp.bfloat16).astype(jnp.float32)
    h = q(h)
    h_v = h @ q(w_f).T + b_f.astype(jnp.float32)
    if aggr == 'gsum':
        g = jax.nn.sigmoid(h @ q(w_g).T + b_g.astype(jnp.float32))
        h_g = h_v * g
    else:
        h_g = h_v
    out = jnp.zeros((num_graphs, h_v.shape[1]), jnp.float32).at[batch].add(h_g)
    if aggr == 'mean':
        cnt = jnp.zeros((num_graphs,), jnp.float32).at[batch].add(1.0)
        out = out / jnp.maximum(cnt, 1.0)[:, None]
    return out


if __name__ == "__main__":
    key = jax.random.PRNGKey(0)
    k_h, k_wf, k_bf, k_wg, k_bg = jax.random.split(key, 5)

    ndim, gdim, num_graphs = 32, 16, 4
    # 4 graphs with 5, 7, 4, 8 nodes -> 24 nodes total.
    batch = jnp.array([0] * 5 + [1] * 7 + [2] * 4 + [3] * 8, dtype=jnp.int32)
    n = batch.shape[0]

    h = jax.random.normal(k_h, (n, ndim), dtype=jnp.float32)
    w_f = jax.random.normal(k_wf, (gdim, ndim), dtype=jnp.float32) * (ndim ** -0.5)
    b_f = jax.random.normal(k_bf, (gdim,), dtype=jnp.float32) * 0.1
    w_g = jax.random.normal(k_wg, (1, ndim), dtype=jnp.float32) * (ndim ** -0.5)
    b_g = jax.random.normal(k_bg, (1,), dtype=jnp.float32) * 0.1

    out_gsum = graph_emb(h, batch, w_f, b_f, w_g, b_g, num_graphs, aggr='gsum')
    out_mean = graph_emb(h, batch, w_f, b_f, w_g, b_g, num_graphs, aggr='mean')
    # Exercise the multi-split (v7x dual-TensorCore) path as well.
    out_gsum2 = graph_emb(h, batch, w_f, b_f, w_g, b_g, num_graphs,
                          aggr='gsum', num_splits=2)
    jax.block_until_ready((out_gsum, out_mean, out_gsum2))

    ref_gsum = _graph_emb_ref(h, batch, w_f, b_f, w_g, b_g, num_graphs, 'gsum')
    ref_mean = _graph_emb_ref(h, batch, w_f, b_f, w_g, b_g, num_graphs, 'mean')

    assert out_gsum.shape == (num_graphs, gdim)
    assert out_mean.shape == (num_graphs, gdim)
    # bf16 node/weight streaming with f32 accumulation -> bf16-level tolerance.
    assert jnp.allclose(out_gsum, ref_gsum, rtol=2e-2, atol=2e-2), (out_gsum, ref_gsum)
    assert jnp.allclose(out_mean, ref_mean, rtol=2e-2, atol=2e-2), (out_mean, ref_mean)
    assert jnp.allclose(out_gsum2, ref_gsum, rtol=2e-2, atol=2e-2), (out_gsum2, ref_gsum)

    print("KERNEL_OK")
</pallas_src>

<mosaic_0001>
module attributes {stable_mosaic.version = 11 : i64} {
  func.func @_graph_emb_kernel(%arg0: i32, %arg1: i32, %arg2: memref<32x32xbf16, #tpu.memory_space<vmem>>, %arg3: memref<32x1xi32, #tpu.memory_space<vmem>>, %arg4: memref<32x128xbf16, #tpu.memory_space<vmem>>, %arg5: memref<1x128xf32, #tpu.memory_space<vmem>>, %arg6: memref<1x8x128xf32, #tpu.memory_space<vmem>>) attributes {dimension_semantics = [#tpu.dimension_semantics<parallel>, #tpu.dimension_semantics<arbitrary>], iteration_bounds = array<i64: 1, 1>, scalar_prefetch = 0 : i64, scratch_operands = 0 : i64, tpu.core_type = #tpu.core_type<tc>, window_params = [{transform_indices = @transform_0, window_bounds = array<i64: 32, 32>}, {transform_indices = @transform_1, window_bounds = array<i64: 32, 1>}, {pipeline_mode = #tpu.pipeline_mode<synchronous>, transform_indices = @transform_2, window_bounds = array<i64: 32, 128>}, {pipeline_mode = #tpu.pipeline_mode<synchronous>, transform_indices = @transform_3, window_bounds = array<i64: 1, 128>}, {transform_indices = @transform_4, window_bounds = array<i64: 1, 8, 128>}]} {
    %c0_i32 = arith.constant 0 : i32
    %0 = arith.cmpi eq, %arg1, %c0_i32 : i32
    %1 = arith.extui %0 : i1 to i32
    %c0_i32_0 = arith.constant 0 : i32
    %2 = arith.cmpi ne, %1, %c0_i32_0 : i32
    scf.if %2 {
      %cst_19 = arith.constant 0.000000e+00 : f32
      %39 = vector.broadcast %cst_19 : f32 to vector<8x128xf32>
      %c0_20 = arith.constant 0 : index
      %c0_21 = arith.constant 0 : index
      %c0_22 = arith.constant 0 : index
      %40 = vector.load %arg6[%c0_20, %c0_21, %c0_22] : memref<1x8x128xf32, #tpu.memory_space<vmem>>, vector<1x8x128xf32>
      %41 = vector.shape_cast %40 : vector<1x8x128xf32> to vector<8x128xf32>
      %42 = vector.shape_cast %39 : vector<8x128xf32> to vector<1x8x128xf32>
      tpu.vector_store %arg6[%c0_20, %c0_21, %c0_22], %42 {strides = array<i32>} : memref<1x8x128xf32, #tpu.memory_space<vmem>>, vector<1x8x128xf32>,
    } else {
    }
    %c0 = arith.constant 0 : index
    %c0_1 = arith.constant 0 : index
    %3 = vector.load %arg2[%c0, %c0_1] : memref<32x32xbf16, #tpu.memory_space<vmem>>, vector<32x32xbf16>
    %c0_2 = arith.constant 0 : index
    %c0_3 = arith.constant 0 : index
    %4 = vector.load %arg4[%c0_2, %c0_3] : memref<32x128xbf16, #tpu.memory_space<vmem>>, vector<32x128xbf16>
    %cst = arith.constant dense<0.000000e+00> : vector<32x128xf32>
    %5 = tpu.matmul %3, %4, %cst {dimension_numbers = #tpu.dot_dimension_numbers<[1], [0], [0], [1], [0, 0, 1, 1], [], []>} : vector<32x32xbf16>, vector<32x128xbf16>, vector<32x128xf32> -> vector<32x128xf32>
    %c0_4 = arith.constant 0 : index
    %c0_5 = arith.constant 0 : index
    %6 = vector.load %arg5[%c0_4, %c0_5] : memref<1x128xf32, #tpu.memory_space<vmem>>, vector<1x128xf32>
    %7 = vector.broadcast %6 : vector<1x128xf32> to vector<32x128xf32>
    %8 = arith.addf %5, %7 : vector<32x128xf32>
    %9 = vector.extract_strided_slice %8 {offsets = [0, 16], sizes = [32, 1], strides = [1, 1]} : vector<32x128xf32> to vector<32x1xf32>
    %10 = math.absf %9 : vector<32x1xf32>
    %cst_6 = arith.constant 0.000000e+00 : f32
    %11 = vector.broadcast %cst_6 : f32 to vector<32x1xf32>
    %12 = arith.subf %11, %10 : vector<32x1xf32>
    %13 = math.exp %12 : vector<32x1xf32>
    %cst_7 = arith.constant 0.000000e+00 : f32
    %14 = vector.broadcast %cst_7 : f32 to vector<32x1xf32>
    %15 = arith.cmpf oge, %9, %14 : vector<32x1xf32>
    %cst_8 = arith.constant 1.000000e+00 : f32
    %16 = vector.broadcast %cst_8 : f32 to vector<32x1xf32>
    %17 = arith.select %15, %16, %13 : vector<32x1xi1>, vector<32x1xf32>
    %cst_9 = arith.constant 1.000000e+00 : f32
    %18 = vector.broadcast %cst_9 : f32 to vector<32x1xf32>
    %19 = arith.addf %18, %13 : vector<32x1xf32>
    %20 = tpu.reciprocal %19 {approx = true} : vector<32x1xf32> -> vector<32x1xf32>
    %21 = arith.mulf %17, %20 : vector<32x1xf32>
    %22 = vector.broadcast %21 : vector<32x1xf32> to vector<32x128xf32>
    %23 = arith.mulf %8, %22 : vector<32x128xf32>
    %c0_10 = arith.constant 0 : index
    %c0_11 = arith.constant 0 : index
    %24 = vector.load %arg3[%c0_10, %c0_11] : memref<32x1xi32, #tpu.memory_space<vmem>>, vector<32x1xi32>
    %25 = tpu.iota {dimensions = array<i32: 1>} : vector<32x8xi32>
    %26 = vector.broadcast %24 : vector<32x1xi32> to vector<32x8xi32>
    %27 = arith.cmpi eq, %26, %25 : vector<32x8xi32>
    %28 = arith.extui %27 : vector<32x8xi1> to vector<32x8xi32>
    %29 = arith.sitofp %28 : vector<32x8xi32> to vector<32x8xf32>
    %30 = arith.truncf %29 : vector<32x8xf32> to vector<32x8xbf16>
    %c0_12 = arith.constant 0 : index
    %c0_13 = arith.constant 0 : index
    %c0_14 = arith.constant 0 : index
    %31 = vector.load %arg6[%c0_12, %c0_13, %c0_14] : memref<1x8x128xf32, #tpu.memory_space<vmem>>, vector<1x8x128xf32>
    %32 = vector.shape_cast %31 : vector<1x8x128xf32> to vector<8x128xf32>
    %33 = arith.truncf %23 : vector<32x128xf32> to vector<32x128xbf16>
    %cst_15 = arith.constant dense<0.000000e+00> : vector<8x128xf32>
    %34 = tpu.matmul %30, %33, %cst_15 {dimension_numbers = #tpu.dot_dimension_numbers<[0], [0], [1], [1], [0, 1, 1, 1], [], []>} : vector<32x8xbf16>, vector<32x128xbf16>, vector<8x128xf32> -> vector<8x128xf32>
    %35 = arith.addf %32, %34 : vector<8x128xf32>
    %c0_16 = arith.constant 0 : index
    %c0_17 = arith.constant 0 : index
    %c0_18 = arith.constant 0 : index
    %36 = vector.load %arg6[%c0_16, %c0_17, %c0_18] : memref<1x8x128xf32, #tpu.memory_space<vmem>>, vector<1x8x128xf32>
    %37 = vector.shape_cast %36 : vector<1x8x128xf32> to vector<8x128xf32>
    %38 = vector.shape_cast %35 : vector<8x128xf32> to vector<1x8x128xf32>
    tpu.vector_store %arg6[%c0_16, %c0_17, %c0_18], %38 {strides = array<i32>} : memref<1x8x128xf32, #tpu.memory_space<vmem>>, vector<1x8x128xf32>,
    return
  }
  func.func @transform_0(%arg0: i32, %arg1: i32) -> (i32, i32) {
    %c1_i32 = arith.constant 1 : i32
    %0 = arith.muli %arg0, %c1_i32 : i32
    %1 = arith.addi %0, %arg1 : i32
    %c0_i32 = arith.constant 0 : i32
    %c0_i32_0 = arith.constant 0 : i32
    return %1, %c0_i32 : i32, i32
  }
  func.func @transform_1(%arg0: i32, %arg1: i32) -> (i32, i32) {
    %c1_i32 = arith.constant 1 : i32
    %0 = arith.muli %arg0, %c1_i32 : i32
    %1 = arith.addi %0, %arg1 : i32
    %c0_i32 = arith.constant 0 : i32
    %c0_i32_0 = arith.constant 0 : i32
    return %1, %c0_i32 : i32, i32
  }
  func.func @transform_2(%arg0: i32, %arg1: i32) -> (i32, i32) {
    %c0_i32 = arith.constant 0 : i32
    %c0_i32_0 = arith.constant 0 : i32
    %c0_i32_1 = arith.constant 0 : i32
    return %c0_i32, %c0_i32_0 : i32, i32
  }
  func.func @transform_3(%arg0: i32, %arg1: i32) -> (i32, i32) {
    %c0_i32 = arith.constant 0 : i32
    %c0_i32_0 = arith.constant 0 : i32
    %c0_i32_1 = arith.constant 0 : i32
    return %c0_i32, %c0_i32_0 : i32, i32
  }
  func.func @transform_4(%arg0: i32, %arg1: i32) -> (i32, i32, i32) {
    %c0_i32 = arith.constant 0 : i32
    %c0_i32_0 = arith.constant 0 : i32
    %c0_i32_1 = arith.constant 0 : i32
    return %arg0, %c0_i32, %c0_i32_0 : i32, i32, i32
  }
}

</mosaic_0001>

<llo_original>
// kernel: tpu_custom_call.1
$region0: #{tpu_custom_call.1}
  #allocation0 [shape = 'u32[]', space=smem, size = 0x4, offset = 0x4, fixed_abs, tag = 'smem constant byte address 0x4 - core index']
  #allocation1 [shape = 'u32[72,128]{1,0:T(1,128)}', space=vmem, size = 0x9000, scoped, tag = 'internal scratch']
  %s0 = inlined_call_operand.vmem [shape: bf16[32,32], index: 0, kind: input, shape index: {}]
  %s1 = inlined_call_operand.vmem [shape: s32[32,1], index: 1, kind: input, shape index: {}]
  %s2 = inlined_call_operand.vmem [shape: bf16[32,128], index: 2, kind: input, shape index: {}]
  %s3 = inlined_call_operand.vmem [shape: f32[1,128], index: 3, kind: input, shape index: {}]
  %s4 = inlined_call_operand.hbm [shape: f32[1,8,128], index: 4, kind: output, shape index: {}]
  %s5 = sld [smem:[#allocation0]]
  $region30: #{tpu_custom_call.1} parent=0
    _
  %s7 = ssub.s32 1, %s5
  %s8 = scalar_select 0, %s7, %s5
  $region1: #{tpu_custom_call.1} parent=0
    #allocation2 [shape = 'u8[4096]{0}', space=vmem, size = 0x1000, scoped, tag = 'output window, operand 0, single buffered']
    #allocation3 [shape = 's32[1]{0}', space=sflag, size = 0x4, scoped, tag = 'scoped memory for tpu_custom_call.1']
    %9 = vsyncpa [#allocation3], 0
    // Predicated region
    $region2: #{tpu_custom_call.1} parent=1 // pred_check
      _
    $region3: #{tpu_custom_call.1} parent=1 // pred_check_branch
      %11 = sbr.rel (0) target = $region5
    $region4: #{tpu_custom_call.1} parent=1 // pred_region
      %s12 = sadd.s32 0, 0
      %s13 = smul.u32 4, %s12
      %p14 = scmp.lt.s32.totalorder %s13, 3
      %s15 = scalar_select %p14, %s13, 3
      %s16 = smul.addr %s15, 4
      %s17 = scalar_lea.vmem %s0, %s16
      %s18 = sadd.s32 0, 0
      %s19 = smul.u32 4, %s18
    $region5: #{tpu_custom_call.1} parent=1 // pred_fallthru
      _
    // Predicated region
    $region6: #{tpu_custom_call.1} parent=1 // pred_check
      _
    $region7: #{tpu_custom_call.1} parent=1 // pred_check_branch
      %21 = sbr.rel (0) target = $region9
    $region8: #{tpu_custom_call.1} parent=1 // pred_region
      %s22 = sadd.s32 0, 0
      %s23 = smul.u32 4, %s22
      %p24 = scmp.lt.s32.totalorder %s23, 3
      %s25 = scalar_select %p24, %s23, 3
      %s26 = smul.addr %s25, 8
      %s27 = scalar_lea.vmem %s1, %s26
      %s28 = sadd.s32 0, 0
      %s29 = smul.u32 4, %s28
    $region9: #{tpu_custom_call.1} parent=1 // pred_fallthru
      _
    // Predicated region
    $region10: #{tpu_custom_call.1} parent=1 // pred_check
      _
    $region11: #{tpu_custom_call.1} parent=1 // pred_check_branch
      %31 = sbr.rel (0) target = $region13
    $region12: #{tpu_custom_call.1} parent=1 // pred_region
      _
    $region13: #{tpu_custom_call.1} parent=1 // pred_fallthru
      _
    // Predicated region
    $region14: #{tpu_custom_call.1} parent=1 // pred_check
      _
    $region15: #{tpu_custom_call.1} parent=1 // pred_check_branch
      %33 = sbr.rel (0) target = $region17
    $region16: #{tpu_custom_call.1} parent=1 // pred_region
      _
    $region17: #{tpu_custom_call.1} parent=1 // pred_fallthru
      _
    %s34 = sadd.s32 0, 0
    %s35 = smul.u32 4, %s34
    %p36 = scmp.lt.s32.totalorder %s35, 3
    %s37 = scalar_select %p36, %s35, 3
    %s38 = smul.addr %s37, 4
    %s39 = scalar_lea.vmem %s0, %s38
    %s40 = sadd.s32 0, 0
    %s41 = smul.u32 4, %s40
    %p42 = scmp.lt.s32.totalorder %s41, 3
    %s43 = scalar_select %p42, %s41, 3
    %s44 = smul.addr %s43, 8
    %s45 = scalar_lea.vmem %s1, %s44
    %s46 = sadd.s32 0, 0
    %s47 = smul.u32 4, %s46
    %p48 = scmp.lt.s32.totalorder %s47, 3
    %s49 = scalar_select %p48, %s47, 3
    %s50 = smul.addr %s49, 4
    %s51 = scalar_lea.vmem %s0, %s50
    %s52 = sadd.s32 0, 0
    %s53 = smul.u32 4, %s52
    %s54 = sadd.s32 0, 0
    %s55 = smul.u32 4, %s54
    %p56 = scmp.lt.s32.totalorder %s55, 3
    %s57 = scalar_select %p56, %s55, 3
    %s58 = smul.addr %s57, 8
    %s59 = scalar_lea.vmem %s1, %s58
    %s60 = sadd.s32 0, 0
    %s61 = smul.u32 4, %s60
    %p63 = scmp.eq.s32.totalorder 0, 0
    // Predicated region
    $region18: #{tpu_custom_call.1} parent=1 // pred_check
      %p64 = pneg %p63
    $region19: #{tpu_custom_call.1} parent=1 // pred_check_branch
      %66 = sbr.rel (%p64) target = $region21
    $region20: #{tpu_custom_call.1} parent=1 // pred_region
      %67 = vst [vmem:[#allocation2] sm:$0xff] 0.0
    $region21: #{tpu_custom_call.1} parent=1 // pred_fallthru
      _
    %v68 = vld [vmem:[%s51] sm:$0xf]
    %v69 = vld [vmem:[%s51 + $0x4] sm:$0xf]
    %v70 = vld [vmem:[%s51 + $0x8] sm:$0xf]
    %v71 = vld [vmem:[%s51 + $0xc] sm:$0xf]
    %v72 = vld [vmem:[%s2] sm:$0xf]
    %v73 = vld [vmem:[%s2 + $0x4] sm:$0xf]
    %v74 = vld [vmem:[%s2 + $0x8] sm:$0xf]
    %v75 = vld [vmem:[%s2 + $0xc] sm:$0xf]
    %v76 = vld [vmem:[%s3] sm:$0x1]
    %v78 = vperm.slane %v76, 0
    %v84 = vunpack.c.l.b16 %v68
    %v85 = vunpack.c.l.b16 %v69
    %v86 = vunpack.c.l.b16 %v70
    %v87 = vunpack.c.l.b16 %v71
    %v88 = vpack.c.b16 %v85, %v84
    %v89 = vpack.c.b16 %v87, %v86
    %v94 = vunpack.c.l.b16 %v72
    %v95 = vunpack.c.l.b16 %v73
    %v96 = vunpack.c.l.b16 %v74
    %v97 = vunpack.c.l.b16 %v75
    %v98 = vpack.c.b16 %v95, %v94
    %v99 = vpack.c.b16 %v97, %v96
    %vm102 = vcmask 261120
    %v104 = vsel %vm102, %v88, 0
    %v107 = vsel %vm102, %v89, 0
    %109 = vmatpush.bf16.msra.mxu0 0
    %110 = vmatpush.bf16.msra.mxu0 0
    %111 = vmatpush.bf16.msra.mxu0 0
    %112 = vmatpush.bf16.msra.mxu0 0
    %113 = vmatpush.bf16.msra.mxu0 0
    %114 = vmatpush.bf16.msra.mxu0 0
    %115 = vmatpush.bf16.msra.mxu0 %v99
    %116 = vmatpush.bf16.msra.mxu0 %v98
    %117 = vmatmul.bf16.gmra.mxu0 %v104
    %v118 = vpop.f32.mrf.mxu0
    %v119 = vadd.f32 %v78, %v118
    %v120 = vpop.f32.mrf.mxu0
    %v121 = vadd.f32 %v78, %v120
    %122 = vmatmul.bf16.gmra.mxu0 %v107
    %v123 = vpop.f32.mrf.mxu0
    %v124 = vadd.f32 %v78, %v123
    %v125 = vpop.f32.mrf.mxu0
    %v126 = vadd.f32 %v78, %v125
    %127 = vdwg.mxu0
    %v128 = vand.u32 2147483647, %v119
    %v129 = vand.u32 2147483647, %v121
    %v130 = vand.u32 2147483647, %v124
    %v131 = vand.u32 2147483647, %v126
    %v132 = vsub.f32 0.0, %v128
    %v133 = vsub.f32 0.0, %v129
    %v134 = vsub.f32 0.0, %v130
    %v135 = vsub.f32 0.0, %v131
    %v136 = vmul.f32 %v132, 1.442695
    %v137 = vpow.pop %v136
    %v138 = vmul.f32 %v133, 1.442695
    %v139 = vpow.pop %v138
    %v140 = vmul.f32 %v134, 1.442695
    %v141 = vpow.pop %v140
    %v142 = vmul.f32 %v135, 1.442695
    %v143 = vpow.pop %v142
    %vm144 = vcmp.ge.f32.partialorder %v119, 0.0
    %vm145 = vcmp.ge.f32.partialorder %v121, 0.0
    %vm146 = vcmp.ge.f32.partialorder %v124, 0.0
    %vm147 = vcmp.ge.f32.partialorder %v126, 0.0
    %v148 = vsel %vm144, 1.0, %v137
    %v149 = vsel %vm145, 1.0, %v139
    %v150 = vsel %vm146, 1.0, %v141
    %v151 = vsel %vm147, 1.0, %v143
    %v152 = vadd.f32 %v137, 1.0
    %v153 = vadd.f32 %v139, 1.0
    %v154 = vadd.f32 %v141, 1.0
    %v155 = vadd.f32 %v143, 1.0
    %v156 = vrcp.pop %v152
    %v157 = vrcp.pop %v153
    %v158 = vrcp.pop %v154
    %v159 = vrcp.pop %v155
    %v160 = vmul.f32 %v148, %v156
    %v161 = vmul.f32 %v149, %v157
    %v162 = vmul.f32 %v150, %v158
    %v163 = vmul.f32 %v151, %v159
    %165 = vset.pattern.permute.xlu0 16
    %166 = vperm.xlu0 %165, %v160
    %v167 = vpop.permute.xlu0 %166
    %170 = vset.pattern.permute.xlu0 16
    %171 = vperm.xlu0 %170, %v161
    %v172 = vpop.permute.xlu0 %171
    %175 = vset.pattern.permute.xlu0 16
    %176 = vperm.xlu0 %175, %v162
    %v177 = vpop.permute.xlu0 %176
    %180 = vset.pattern.permute.xlu0 16
    %181 = vperm.xlu0 %180, %v163
    %v182 = vpop.permute.xlu0 %181
    %v184 = vmul.f32 %v119, %v167
    %v185 = vmul.f32 %v121, %v172
    %v186 = vmul.f32 %v124, %v177
    %v187 = vmul.f32 %v126, %v182
    %v188 = vld [vmem:[%s59] sm:$0xff]
    %v189 = vld [vmem:[%s59 + $0x8] sm:$0xff]
    %v190 = vld [vmem:[%s59 + $0x10] sm:$0xff]
    %v191 = vld [vmem:[%s59 + $0x18] sm:$0xff]
    %v192 = vlaneseq
    %v193 = vand.u32 %v192, 127
    %194 = vset.pattern.permute.xlu0 0
    %195 = vperm.xlu0 %194, %v188
    %v196 = vpop.permute.xlu0 %195
    %197 = vset.pattern.permute.xlu0 0
    %198 = vperm.xlu0 %197, %v189
    %v199 = vpop.permute.xlu0 %198
    %200 = vset.pattern.permute.xlu0 0
    %201 = vperm.xlu0 %200, %v190
    %v202 = vpop.permute.xlu0 %201
    %203 = vset.pattern.permute.xlu0 0
    %204 = vperm.xlu0 %203, %v191
    %v205 = vpop.permute.xlu0 %204
    %vm206 = vcmp.eq.s32.totalorder %v196, %v193
    %vm207 = vcmp.eq.s32.totalorder %v199, %v193
    %vm208 = vcmp.eq.s32.totalorder %v202, %v193
    %vm209 = vcmp.eq.s32.totalorder %v205, %v193
    %v210 = vsel %vm206, 1, 0
    %v211 = vsel %vm207, 1, 0
    %v212 = vsel %vm208, 1, 0
    %v213 = vsel %vm209, 1, 0
    %v214 = vcvt.s32.f32 %v210
    %v215 = vcvt.s32.f32 %v211
    %v216 = vcvt.s32.f32 %v212
    %v217 = vcvt.s32.f32 %v213
    %v218 = vpack.c.bf16 %v215, %v214
    %v219 = vpack.c.bf16 %v217, %v216
    %v220 = vld [vmem:[#allocation2] sm:$0xff]
    %v221 = vpack.c.bf16 %v185, %v184
    %v222 = vpack.c.bf16 %v187, %v186
    %223 = vxpose.xlu0.c.b16.start [1/8] %v218, 128
    %224 = vxpose.xlu0.c.b16.cont [2/8] %v219, 128
    %225 = vxpose.xlu0.c.b16.cont [3/8] 0, 128
    %226 = vxpose.xlu0.c.b16.cont [4/8] 0, 128
    %227 = vxpose.xlu0.c.b16.cont [5/8] 0, 128
    %228 = vxpose.xlu0.c.b16.cont [6/8] 0, 128
    %229 = vxpose.xlu0.c.b16.cont [7/8] 0, 128
    %230 = vxpose.xlu0.c.b16.end [8/8] 0, 128
    %v231 = vpop.trf.xlu0
    %v232 = vpop.trf.xlu0
    %v233 = vpop.trf.xlu0
    %v234 = vpop.trf.xlu0
    %v235 = vpop.trf.xlu0
    %v236 = vpop.trf.xlu0
    %v237 = vpop.trf.xlu0
    %v238 = vpop.trf.xlu0
    %v240 = vsel %vm102, %v231, 0
    %242 = vmatpush.bf16.msra.mxu0 0
    %243 = vmatpush.bf16.msra.mxu0 0
    %244 = vmatpush.bf16.msra.mxu0 0
    %245 = vmatpush.bf16.msra.mxu0 0
    %246 = vmatpush.bf16.msra.mxu0 0
    %247 = vmatpush.bf16.msra.mxu0 0
    %248 = vmatpush.bf16.msra.mxu0 %v222
    %249 = vmatpush.bf16.msra.mxu0 %v221
    %250 = vmatmul.bf16.gmra.mxu0 %v240
    %v251 = vpop.f32.mrf.mxu0
    %v252 = vadd.f32 0.0, %v251
    %v253 = vpop.f32.mrf.mxu0
    %254 = vdwg.mxu0
    %v255 = vadd.f32 %v220, %v252
    %256 = vst [vmem:[#allocation2] sm:$0xff] %v255
    // Predicated region
    $region22: #{tpu_custom_call.1} parent=1 // pred_check
      _
    $region23: #{tpu_custom_call.1} parent=1 // pred_check_branch
      %258 = sbr.rel (0) target = $region25
    $region24: #{tpu_custom_call.1} parent=1 // pred_region
      %260 = vsyncadd [#allocation3], 0
      %s262 = sshll.u32 [#allocation2], 4
      %s263 = int_to_ptr.vmem [resolvable:$true] %s262
      %s264 = sshll.u32 %s4, 4
      %s265 = int_to_ptr.hbm [resolvable:$true] %s264
      %267 = dma.vmem_to_hbm [thread:$0]  %s263, 128, %s265, [#allocation3]
    $region25: #{tpu_custom_call.1} parent=1 // pred_fallthru
      _
    // Predicated region
    $region26: #{tpu_custom_call.1} parent=1 // pred_check
      _
    $region27: #{tpu_custom_call.1} parent=1 // pred_check_branch
      %269 = sbr.rel (0) target = $region29
    $region28: #{tpu_custom_call.1} parent=1 // pred_region
      %271 = dma.done [#allocation3], 128
    $region29: #{tpu_custom_call.1} parent=1 // pred_fallthru
      _
    %272 = vsyncpa [#allocation3], 1

</llo_original>
